<compile_context>
chip_gen: v5e
topology: v5e:2x2
jax: 0.10.0
libtpu: 0.0.40
codegen_flags: <defaults>
</compile_context>

<pallas_src>
import jax
import jax.numpy as jnp
from jax.experimental import pallas as pl
from jax.experimental.pallas import tpu as pltpu


def prenorm_kernel(x_ref, w_ref, b_ref, o_ref):
    # dtype-dependent eps, matching the PyTorch module (checked on the ORIGINAL dtype).
    eps = 1e-5 if x_ref.dtype == jnp.float32 else 1e-3

    # Stats path in f32 regardless of input dtype (matches PyTorch half-precision
    # LayerNorm accumulation; also v5e has no bf16 VPU/EUP).
    x = x_ref[0].astype(jnp.float32)                 # (C, TL)

    # One-pass LayerNorm statistics over the channel axis (sublane axis, fully resident).
    mean = jnp.mean(x, axis=0, keepdims=True)        # (1, TL)
    mean_sq = jnp.mean(x * x, axis=0, keepdims=True)  # (1, TL)
    var = mean_sq - mean * mean
    normed = (x - mean) * jax.lax.rsqrt(var + eps)   # (C, TL); gain g folded into w

    # fn = pointwise Conv1d(dim, dim, 1): out[o, l] = sum_c w_eff[o, c] * normed[c, l] + b[o]
    # Matmul operands in the weight dtype (bf16 weights -> bf16 MXU), f32 accumulation.
    y = jnp.dot(w_ref[...], normed.astype(w_ref.dtype),
                preferred_element_type=jnp.float32)  # (C, TL)
    y = y + b_ref[...].astype(jnp.float32)           # (C, TL) + (C, 1)

    o_ref[0] = y.astype(o_ref.dtype)


def _choose_tile_l(C, L, itemsize):
    """Lane-dense L tile that keeps double-buffered slabs well under the smallest
    per-generation VMEM budget (v7x has only 64 MiB physical)."""
    if L <= 1024 or L % 128 != 0:
        # Small or ragged sequence: one full-L tile (satisfies the
        # "block equals the full dim" layout rule even when L % 128 != 0).
        return L
    budget = 24 * 1024 * 1024            # conservative across v5e / v6e / v7x
    per_col = 4 * C * itemsize           # 2x input + 2x output double buffers
    tl = (budget // per_col) // 128 * 128
    return int(max(128, min(tl, 2048, L)))


def prenorm_forward(x, g, w, b, *, tile_l=None):
    """x: (B, C, L); g: (1, C, 1); w: (C, C) conv1x1 weight; b: (C,) conv bias."""
    B, C, L = x.shape
    itemsize = jnp.dtype(x.dtype).itemsize

    # Fold the LayerNorm gain into the conv weight: W @ (g ⊙ x̂) == (W·diag(g)) @ x̂.
    w_eff = (w * g.reshape(1, C)).astype(x.dtype)    # (C, C); bf16 inputs -> bf16 MXU operand
    b_eff = b.reshape(C, 1)                          # (C, 1)

    tl = tile_l if tile_l is not None else _choose_tile_l(C, L, itemsize)
    grid = (B, pl.cdiv(L, tl))

    # Size the scoped VMEM limit from the actual tile footprint (2x in + 2x out
    # double buffers + resident weight/bias), clamped to a safe cross-generation range.
    need = (4 * C * tl + C * C + 2 * C) * itemsize
    vmem_limit = int(min(max(2 * need, 16 * 1024 * 1024), 48 * 1024 * 1024))

    return pl.pallas_call(
        prenorm_kernel,
        out_shape=jax.ShapeDtypeStruct((B, C, L), x.dtype),
        grid=grid,
        in_specs=[
            pl.BlockSpec((1, C, tl), lambda i, j: (i, 0, j)),  # x: one (C, TL) slab per step
            pl.BlockSpec((C, C), lambda i, j: (0, 0)),         # fused conv weight: resident
            pl.BlockSpec((C, 1), lambda i, j: (0, 0)),         # conv bias: resident
        ],
        out_specs=pl.BlockSpec((1, C, tl), lambda i, j: (i, 0, j)),
        compiler_params=pltpu.CompilerParams(
            dimension_semantics=("parallel", "parallel"),
            vmem_limit_bytes=vmem_limit,
        ),
    )(x, w_eff, b_eff)


def prenorm_reference(x, g, w, b):
    """Unfused reference matching the PyTorch module (two-pass variance, explicit g)."""
    eps = 1e-5 if x.dtype == jnp.float32 else 1e-3
    xf = x.astype(jnp.float32)
    mean = jnp.mean(xf, axis=1, keepdims=True)
    var = jnp.mean((xf - mean) ** 2, axis=1, keepdims=True)
    normed = (xf - mean) * jax.lax.rsqrt(var + eps) * g.astype(jnp.float32)
    y = jnp.einsum("oc,bcl->bol", w.astype(jnp.float32), normed) + b.reshape(1, -1, 1)
    return y.astype(x.dtype)


if __name__ == "__main__":
    # Small but lane-dense demo shapes (L a multiple of 128 -> unmasked stores).
    B, C, L = 2, 8, 256

    key = jax.random.PRNGKey(0)
    kx, kw, kb = jax.random.split(key, 3)

    x = jax.random.normal(kx, (B, C, L), dtype=jnp.float32)

    g = jnp.ones((1, C, 1), dtype=jnp.float32)                   # LayerNorm gain (init = ones)
    w = jax.random.normal(kw, (C, C), dtype=jnp.float32) * 0.1    # fn: Conv1d(dim, dim, 1) weight
    b = jax.random.normal(kb, (C,), dtype=jnp.float32) * 0.1      # fn: Conv1d bias

    out = prenorm_forward(x, g, w, b)
    out = jax.block_until_ready(out)

    ref = prenorm_reference(x, g, w, b)
    assert out.shape == (B, C, L)
    assert jnp.allclose(out, ref, atol=1e-4, rtol=1e-4), "mismatch vs reference"

    print("KERNEL_OK")
</pallas_src>

<mosaic_0001>
module attributes {stable_mosaic.version = 11 : i64} {
  func.func @prenorm_kernel(%arg0: i32, %arg1: i32, %arg2: memref<1x8x256xf32, #tpu.memory_space<vmem>>, %arg3: memref<8x8xf32, #tpu.memory_space<vmem>>, %arg4: memref<8x1xf32, #tpu.memory_space<vmem>>, %arg5: memref<1x8x256xf32, #tpu.memory_space<vmem>>) attributes {dimension_semantics = [#tpu.dimension_semantics<parallel>, #tpu.dimension_semantics<parallel>], iteration_bounds = array<i64: 2, 1>, scalar_prefetch = 0 : i64, scratch_operands = 0 : i64, tpu.core_type = #tpu.core_type<tc>, window_params = [{transform_indices = @transform_0, window_bounds = array<i64: 1, 8, 256>}, {pipeline_mode = #tpu.pipeline_mode<synchronous>, transform_indices = @transform_1, window_bounds = array<i64: 8, 8>}, {pipeline_mode = #tpu.pipeline_mode<synchronous>, transform_indices = @transform_2, window_bounds = array<i64: 8, 1>}, {transform_indices = @transform_3, window_bounds = array<i64: 1, 8, 256>}]} {
    %c0 = arith.constant 0 : index
    %c0_0 = arith.constant 0 : index
    %c0_1 = arith.constant 0 : index
    %0 = vector.load %arg2[%c0, %c0_0, %c0_1] : memref<1x8x256xf32, #tpu.memory_space<vmem>>, vector<1x8x256xf32>
    %1 = vector.shape_cast %0 : vector<1x8x256xf32> to vector<8x256xf32>
    %cst = arith.constant dense<0.000000e+00> : vector<256xf32>
    %2 = vector.multi_reduction <add>, %1, %cst [0] : vector<8x256xf32> to vector<256xf32>
    %3 = vector.shape_cast %2 : vector<256xf32> to vector<1x256xf32>
    %cst_2 = arith.constant 8.000000e+00 : f32
    %4 = vector.broadcast %cst_2 : f32 to vector<1x256xf32>
    %5 = arith.divf %3, %4 : vector<1x256xf32>
    %6 = arith.mulf %1, %1 : vector<8x256xf32>
    %cst_3 = arith.constant dense<0.000000e+00> : vector<256xf32>
    %7 = vector.multi_reduction <add>, %6, %cst_3 [0] : vector<8x256xf32> to vector<256xf32>
    %8 = vector.shape_cast %7 : vector<256xf32> to vector<1x256xf32>
    %cst_4 = arith.constant 8.000000e+00 : f32
    %9 = vector.broadcast %cst_4 : f32 to vector<1x256xf32>
    %10 = arith.divf %8, %9 : vector<1x256xf32>
    %11 = arith.mulf %5, %5 : vector<1x256xf32>
    %12 = arith.subf %10, %11 : vector<1x256xf32>
    %13 = vector.broadcast %5 : vector<1x256xf32> to vector<8x256xf32>
    %14 = arith.subf %1, %13 : vector<8x256xf32>
    %cst_5 = arith.constant 9.99999974E-6 : f32
    %15 = vector.broadcast %cst_5 : f32 to vector<1x256xf32>
    %16 = arith.addf %12, %15 : vector<1x256xf32>
    %17 = math.rsqrt %16 : vector<1x256xf32>
    %18 = vector.broadcast %17 : vector<1x256xf32> to vector<8x256xf32>
    %19 = arith.mulf %14, %18 : vector<8x256xf32>
    %c0_6 = arith.constant 0 : index
    %c0_7 = arith.constant 0 : index
    %20 = vector.load %arg3[%c0_6, %c0_7] : memref<8x8xf32, #tpu.memory_space<vmem>>, vector<8x8xf32>
    %cst_8 = arith.constant dense<0.000000e+00> : vector<8x256xf32>
    %21 = tpu.matmul %20, %19, %cst_8 {dimension_numbers = #tpu.dot_dimension_numbers<[1], [0], [0], [1], [0, 0, 1, 1], [], []>} : vector<8x8xf32>, vector<8x256xf32>, vector<8x256xf32> -> vector<8x256xf32>
    %c0_9 = arith.constant 0 : index
    %c0_10 = arith.constant 0 : index
    %22 = vector.load %arg4[%c0_9, %c0_10] : memref<8x1xf32, #tpu.memory_space<vmem>>, vector<8x1xf32>
    %23 = vector.broadcast %22 : vector<8x1xf32> to vector<8x256xf32>
    %24 = arith.addf %21, %23 : vector<8x256xf32>
    %c0_11 = arith.constant 0 : index
    %c0_12 = arith.constant 0 : index
    %c0_13 = arith.constant 0 : index
    %25 = vector.load %arg5[%c0_11, %c0_12, %c0_13] : memref<1x8x256xf32, #tpu.memory_space<vmem>>, vector<1x8x256xf32>
    %26 = vector.shape_cast %25 : vector<1x8x256xf32> to vector<8x256xf32>
    %27 = vector.shape_cast %24 : vector<8x256xf32> to vector<1x8x256xf32>
    tpu.vector_store %arg5[%c0_11, %c0_12, %c0_13], %27 {strides = array<i32>} : memref<1x8x256xf32, #tpu.memory_space<vmem>>, vector<1x8x256xf32>,
    return
  }
  func.func @transform_0(%arg0: i32, %arg1: i32) -> (i32, i32, i32) {
    %c0_i32 = arith.constant 0 : i32
    %c0_i32_0 = arith.constant 0 : i32
    return %arg0, %c0_i32, %arg1 : i32, i32, i32
  }
  func.func @transform_1(%arg0: i32, %arg1: i32) -> (i32, i32) {
    %c0_i32 = arith.constant 0 : i32
    %c0_i32_0 = arith.constant 0 : i32
    %c0_i32_1 = arith.constant 0 : i32
    return %c0_i32, %c0_i32_0 : i32, i32
  }
  func.func @transform_2(%arg0: i32, %arg1: i32) -> (i32, i32) {
    %c0_i32 = arith.constant 0 : i32
    %c0_i32_0 = arith.constant 0 : i32
    %c0_i32_1 = arith.constant 0 : i32
    return %c0_i32, %c0_i32_0 : i32, i32
  }
  func.func @transform_3(%arg0: i32, %arg1: i32) -> (i32, i32, i32) {
    %c0_i32 = arith.constant 0 : i32
    %c0_i32_0 = arith.constant 0 : i32
    return %arg0, %c0_i32, %arg1 : i32, i32, i32
  }
}

</mosaic_0001>

<llo_original>
// kernel: tpu_custom_call.1
$region0: #{tpu_custom_call.1}
  #allocation0 [shape = 'u32[]', space=smem, size = 0x4, offset = 0x4, fixed_abs, tag = 'smem constant byte address 0x4 - core index']
  #allocation1 [shape = 'u32[72,128]{1,0:T(1,128)}', space=vmem, size = 0x9000, scoped, tag = 'internal scratch']
  %s0 = inlined_call_operand.hbm [shape: f32[2,8,256], index: 0, kind: input, shape index: {}]
  %s1 = inlined_call_operand.vmem [shape: f32[8,8], index: 1, kind: input, shape index: {}]
  %s2 = inlined_call_operand.vmem [shape: f32[8,1], index: 2, kind: input, shape index: {}]
  %s3 = inlined_call_operand.hbm [shape: f32[2,8,256], index: 3, kind: output, shape index: {}]
  %s4 = sld [smem:[#allocation0]]
  $region49: #{tpu_custom_call.1} parent=0
    _
  %s6 = ssub.s32 1, %s4
  %s7 = scalar_select 0, %s6, %s4
  $region1: #{tpu_custom_call.1} parent=0
    #allocation2 [shape = 'u8[16384]{0}', space=vmem, size = 0x4000, scoped, tag = 'input window, operand 0']
    #allocation3 [shape = 's32[2]{0}', space=sflag, size = 0x8, scoped, tag = 'scoped memory for tpu_custom_call.1']
    #allocation4 [shape = 's32[2]{0}', space=sflag, size = 0x8, scoped, tag = 'scoped memory for tpu_custom_call.1']
    #allocation5 [shape = 'u8[16384]{0}', space=vmem, size = 0x4000, scoped, tag = 'output window, operand 0']
    %8 = vsyncpa [#allocation3], 0
    %s9 = scalar_lea.sflag [#allocation3], 1
    %10 = vsyncpa %s9, 0
    %11 = vsyncpa [#allocation4], 0
    %s12 = scalar_lea.sflag [#allocation4], 1
    %13 = vsyncpa %s12, 0
    loop: start=0, step=1, limit=4
    $region2: #{tpu_custom_call.1} parent=1 // loop_pre_header
      _
    $region3: #{tpu_custom_call.1} parent=1 // loop_header
      %s15 = sphi 0, %s19
      %p16 = scmp.ge.s32.totalorder %s15, 4
      %s22 = sphi 0, %s34
      %s23 = sphi 0, %s30
      %s24 = sphi 0, %s22
      %s25 = sphi 0, %s23
      %s26 = sphi 0, %s24
      %s27 = sphi 0, %s25
      %s39 = sphi 0, %s41
      %s42 = sphi 0, %s39
      %s43 = sphi 0, %s42
      %s59 = sphi 0, %s43
      %s63 = sphi 0, %s63
      %s65 = sphi 0, %s63
      %s66 = sphi 0, %s65
      %s80 = sphi 0, %s66
      %s84 = sphi 0, %s84
      %s86 = sphi 0, %s84
      %s87 = sphi 0, %s86
      %s101 = sphi 0, %s87
      %s109 = sphi 0, %s111
      %s112 = sphi 0, %s109
      %s113 = sphi 0, %s112
      %s129 = sphi 0, %s113
    $region4: #{tpu_custom_call.1} parent=1 // loop_header_branch
      %18 = sbr.rel (%p16) target = $region8
    $region5: #{tpu_custom_call.1} parent=1 // loop_body
      %s20 = ssub.s32 %s15, 1
      %s21 = ssub.s32 %s15, 2
      %s28 = sadd.s32 1, %s23
      %p29 = scmp.ge.s32.totalorder %s28, 1
      %s30 = scalar_select %p29, 0, %s28
      %s31 = sadd.s32 1, %s22
      %s32 = scalar_select %p29, %s31, %s22
      %p33 = scmp.ge.s32.totalorder %s32, 2
      %s34 = scalar_select %p33, 0, %s32
      %s35 = ssub.s32 %s22, %s34
      %s36 = ssub.s32 %s23, %s30
      %s37 = sor.u32 %s35, %s36
      %p38 = scmp.eq.s32.totalorder %s37, 0
      %s40 = sadd.s32 %s39, 1
      %s41 = scalar_select %p38, %s39, %s40
      %p44 = pneg %p38
      %p45 = scmp.eq.s32.totalorder %s15, 1
      %p46 = por %p44, %p45
      %p47 = scmp.ne.s32.totalorder %s39, %s42
      %p48 = scmp.eq.s32.totalorder %s15, 0
      %p49 = por %p47, %p48
      %p50 = scmp.ne.s32.totalorder %s39, %s42
      %p51 = scmp.eq.s32.totalorder %s20, 1
      %p52 = por %p50, %p51
      %p53 = scmp.ne.s32.totalorder %s42, %s43
      %p54 = scmp.eq.s32.totalorder %s20, 0
      %p55 = por %p53, %p54
      %p56 = scmp.ne.s32.totalorder %s42, %s43
      %p57 = scmp.eq.s32.totalorder %s21, 1
      %p58 = por %p56, %p57
      %p60 = scmp.ne.s32.totalorder %s43, %s59
      %p61 = scmp.eq.s32.totalorder %s21, 0
      %p62 = por %p60, %p61
      %s64 = sadd.s32 %s63, 1
      %p67 = scmp.eq.s32.totalorder %s15, 1
      %p68 = scmp.ne.s32.totalorder %s63, %s65
      %p69 = scmp.eq.s32.totalorder %s15, 0
      %p70 = por %p68, %p69
      %p71 = scmp.ne.s32.totalorder %s63, %s65
      %p72 = scmp.eq.s32.totalorder %s20, 1
      %p73 = por %p71, %p72
      %p74 = scmp.ne.s32.totalorder %s65, %s66
      %p75 = scmp.eq.s32.totalorder %s20, 0
      %p76 = por %p74, %p75
      %p77 = scmp.ne.s32.totalorder %s65, %s66
      %p78 = scmp.eq.s32.totalorder %s21, 1
      %p79 = por %p77, %p78
      %p81 = scmp.ne.s32.totalorder %s66, %s80
      %p82 = scmp.eq.s32.totalorder %s21, 0
      %p83 = por %p81, %p82
      %s85 = sadd.s32 %s84, 1
      %p88 = scmp.eq.s32.totalorder %s15, 1
      %p89 = scmp.ne.s32.totalorder %s84, %s86
      %p90 = scmp.eq.s32.totalorder %s15, 0
      %p91 = por %p89, %p90
      %p92 = scmp.ne.s32.totalorder %s84, %s86
      %p93 = scmp.eq.s32.totalorder %s20, 1
      %p94 = por %p92, %p93
      %p95 = scmp.ne.s32.totalorder %s86, %s87
      %p96 = scmp.eq.s32.totalorder %s20, 0
      %p97 = por %p95, %p96
      %p98 = scmp.ne.s32.totalorder %s86, %s87
      %p99 = scmp.eq.s32.totalorder %s21, 1
      %p100 = por %p98, %p99
      %p102 = scmp.ne.s32.totalorder %s87, %s101
      %p103 = scmp.eq.s32.totalorder %s21, 0
      %p104 = por %p102, %p103
      %s105 = ssub.s32 %s22, %s34
      %s106 = ssub.s32 %s23, %s30
      %s107 = sor.u32 %s105, %s106
      %p108 = scmp.eq.s32.totalorder %s107, 0
      %s110 = sadd.s32 %s109, 1
      %s111 = scalar_select %p108, %s109, %s110
      %p114 = pneg %p108
      %p115 = scmp.eq.s32.totalorder %s15, 1
      %p116 = por %p114, %p115
      %p117 = scmp.ne.s32.totalorder %s109, %s112
      %p118 = scmp.eq.s32.totalorder %s15, 0
      %p119 = por %p117, %p118
      %p120 = scmp.ne.s32.totalorder %s109, %s112
      %p121 = scmp.eq.s32.totalorder %s20, 1
      %p122 = por %p120, %p121
      %p123 = scmp.ne.s32.totalorder %s112, %s113
      %p124 = scmp.eq.s32.totalorder %s20, 0
      %p125 = por %p123, %p124
      %p126 = scmp.ne.s32.totalorder %s112, %s113
      %p127 = scmp.eq.s32.totalorder %s21, 1
      %p128 = por %p126, %p127
      %p130 = scmp.ne.s32.totalorder %s113, %s129
      %p131 = scmp.eq.s32.totalorder %s21, 0
      %p132 = por %p130, %p131
      %p133 = scmp.le.s32.totalorder 1, %s15
      %p134 = scmp.lt.s32.totalorder %s15, 3
      %p135 = pnand %p133, %p134
      %p136 = pneg %p135
      // Predicated region
      $region9: #{tpu_custom_call.1} parent=5 // pred_check
        _
      $region10: #{tpu_custom_call.1} parent=5 // pred_check_branch
        %138 = sbr.rel (%p135) target = $region12
      $region11: #{tpu_custom_call.1} parent=5 // pred_region
        %s139 = ssub.s32 %s15, 1
        // Predicated region
        $region13: #{tpu_custom_call.1} parent=11 // pred_check
          %p140 = pneg %p76
        $region14: #{tpu_custom_call.1} parent=11 // pred_check_branch
          %142 = sbr.rel (%p140) target = $region16
        $region15: #{tpu_custom_call.1} parent=11 // pred_region
          _
        $region16: #{tpu_custom_call.1} parent=11 // pred_fallthru
          _
        // Predicated region
        $region17: #{tpu_custom_call.1} parent=11 // pred_check
          %p143 = pneg %p97
        $region18: #{tpu_custom_call.1} parent=11 // pred_check_branch
          %145 = sbr.rel (%p143) target = $region20
        $region19: #{tpu_custom_call.1} parent=11 // pred_region
          _
        $region20: #{tpu_custom_call.1} parent=11 // pred_fallthru
          _
      $region12: #{tpu_custom_call.1} parent=5 // pred_fallthru
        _
      %p146 = scmp.lt.s32.totalorder %s15, 2
      // Predicated region
      $region21: #{tpu_custom_call.1} parent=5 // pred_check
        %p147 = pneg %p146
      $region22: #{tpu_custom_call.1} parent=5 // pred_check_branch
        %149 = sbr.rel (%p147) target = $region24
      $region23: #{tpu_custom_call.1} parent=5 // pred_region
        // Predicated region
        $region25: #{tpu_custom_call.1} parent=23 // pred_check
          %p150 = pneg %p49
        $region26: #{tpu_custom_call.1} parent=23 // pred_check_branch
          %152 = sbr.rel (%p150) target = $region28
        $region27: #{tpu_custom_call.1} parent=23 // pred_region
          %s153 = sand.u32 %s39, 1
          %s154 = scalar_lea.sflag [#allocation3], %s153
          %s155 = sand.u32 %s39, 1
          %s156 = smul.addr %s155, 16
          %s157 = scalar_lea.vmem [#allocation2], %s156
          %s158 = smul.u32 2, %s23
          %160 = vsyncadd %s154, 0
          %s161 = smul.addr %s22, 2
          %s162 = sadd.s32 %s158, %s161
          %s163 = smul.addr %s162, 8
          %s164 = scalar_lea.hbm %s0, %s163
          %s166 = sshll.u32 %s164, 4
          %s167 = int_to_ptr.hbm [resolvable:$true] %s166
          %s168 = sshll.u32 %s157, 4
          %s169 = int_to_ptr.vmem [resolvable:$true] %s168
          %171 = dma.hbm_to_vmem [thread:$0]  %s167, 256, %s169, %s154
        $region28: #{tpu_custom_call.1} parent=23 // pred_fallthru
          _
      $region24: #{tpu_custom_call.1} parent=5 // pred_fallthru
        _
      %p172 = scmp.le.s32.totalorder 1, %s15
      %p173 = scmp.lt.s32.totalorder %s15, 3
      %p174 = pnand %p172, %p173
      %p175 = pneg %p174
      // Predicated region
      $region29: #{tpu_custom_call.1} parent=5 // pred_check
        _
      $region30: #{tpu_custom_call.1} parent=5 // pred_check_branch
        %177 = sbr.rel (%p174) target = $region32
      $region31: #{tpu_custom_call.1} parent=5 // pred_region
        %s178 = ssub.s32 %s15, 1
        %s179 = sand.u32 %s42, 1
        %s180 = scalar_lea.sflag [#allocation3], %s179
        %s181 = sand.u32 %s42, 1
        %s182 = smul.addr %s181, 16
        %s183 = scalar_lea.vmem [#allocation2], %s182
        // Predicated region
        $region33: #{tpu_custom_call.1} parent=31 // pred_check
          %p184 = pneg %p55
        $region34: #{tpu_custom_call.1} parent=31 // pred_check_branch
          %186 = sbr.rel (%p184) target = $region36
        $region35: #{tpu_custom_call.1} parent=31 // pred_region
          %188 = dma.done %s180, 256
        $region36: #{tpu_custom_call.1} parent=31 // pred_fallthru
          _
        %s189 = sand.u32 %s42, 1
        %s190 = scalar_lea.sflag [#allocation3], %s189
        %s191 = sand.u32 %s42, 1
        %s192 = smul.addr %s191, 16
        %s193 = scalar_lea.vmem [#allocation2], %s192
        %p194 = pneg %p55
        %p195 = pneg %p52
        %p196 = pneg %p76
        %p197 = pneg %p73
        %p198 = pneg %p97
        %p199 = pneg %p94
        %p200 = pneg %p125
        %p201 = pneg %p122
        %s202 = sand.u32 %s112, 1
        %s203 = scalar_lea.sflag [#allocation4], %s202
        %s204 = sand.u32 %s112, 1
        %s205 = smul.addr %s204, 16
        %s206 = scalar_lea.vmem [#allocation5], %s205
        %s207 = smul.u32 2, %s25
        %s208 = smul.u32 2, %s25
        %v209 = vld [vmem:[%s183] sm:$0xff]
        %v210 = vld [vmem:[%s183 + $0x8] sm:$0xff]
        %v211 = vrot.slane %v209, 4
        %v212 = vadd.f32 %v209, %v211
        %v213 = vrot.slane %v212, 2
        %v214 = vadd.f32 %v212, %v213
        %v215 = vrot.slane %v214, 1
        %v216 = vadd.f32 %v214, %v215
        %v217 = vrot.slane %v210, 4
        %v218 = vadd.f32 %v210, %v217
        %v219 = vrot.slane %v218, 2
        %v220 = vadd.f32 %v218, %v219
        %v221 = vrot.slane %v220, 1
        %v222 = vadd.f32 %v220, %v221
        %v223 = vrcp.pop 8.0
        %v224 = vmul.f32 8.0, %v223
        %v225 = vsub.f32 1.0, %v224
        %v226 = vmul.f32 %v223, %v225
        %v227 = vadd.f32 %v223, %v226
        %vm228 = vweird.f32 %v223
        %v229 = vsel %vm228, %v223, %v227
        %v230 = vmul.f32 %v216, %v229
        %v231 = vmul.f32 %v222, %v229
        %v232 = vmul.f32 %v209, %v209
        %v233 = vmul.f32 %v210, %v210
        %v234 = vrot.slane %v232, 4
        %v235 = vadd.f32 %v232, %v234
        %v236 = vrot.slane %v235, 2
        %v237 = vadd.f32 %v235, %v236
        %v238 = vrot.slane %v237, 1
        %v239 = vadd.f32 %v237, %v238
        %v240 = vrot.slane %v233, 4
        %v241 = vadd.f32 %v233, %v240
        %v242 = vrot.slane %v241, 2
        %v243 = vadd.f32 %v241, %v242
        %v244 = vrot.slane %v243, 1
        %v245 = vadd.f32 %v243, %v244
        %v246 = vmul.f32 %v239, %v229
        %v247 = vmul.f32 %v245, %v229
        %v248 = vmul.f32 %v230, %v230
        %v249 = vmul.f32 %v231, %v231
        %v250 = vsub.f32 %v246, %v248
        %v251 = vsub.f32 %v247, %v249
        %v252 = vsub.f32 %v209, %v230
        %v253 = vsub.f32 %v210, %v231
        %v254 = vadd.f32 %v250, 1e-05
        %v255 = vadd.f32 %v251, 1e-05
        %v256 = vrsqrt.pop %v254
        %v257 = vmul.f32 %v256, %v254
        %v258 = vmul.f32 %v257, %v256
        %v259 = vmul.f32 0.5, %v258
        %v260 = vsub.f32 1.5, %v259
        %v261 = vmul.f32 %v256, %v260
        %vm262 = vweird.f32 %v254
        %vm263 = vweird.f32 %v256
        %vm264 = vmor %vm262, %vm263
        %v265 = vsel %vm264, %v256, %v261
        %v266 = vrsqrt.pop %v255
        %v267 = vmul.f32 %v266, %v255
        %v268 = vmul.f32 %v267, %v266
        %v269 = vmul.f32 0.5, %v268
        %v270 = vsub.f32 1.5, %v269
        %v271 = vmul.f32 %v266, %v270
        %vm272 = vweird.f32 %v255
        %vm273 = vweird.f32 %v266
        %vm274 = vmor %vm272, %vm273
        %v275 = vsel %vm274, %v266, %v271
        %v276 = vmul.f32 %v252, %v265
        %v277 = vmul.f32 %v253, %v275
        %v278 = vld [vmem:[%s1] sm:$0xff]
        %v279 = vld [vmem:[%s2] sm:$0xff]
        %281 = vset.pattern.permute.xlu0 0
        %282 = vperm.xlu0 %281, %v279
        %v283 = vpop.permute.xlu0 %282
        %vm285 = vcmask 64512
        %v287 = vsel %vm285, %v278, 0
        %289 = vmatpush.msra.mxu0 0.0
        %290 = vmatpush.msra.mxu0 0.0
        %291 = vmatpush.msra.mxu0 0.0
        %292 = vmatpush.msra.mxu0 0.0
        %293 = vmatpush.msra.mxu0 0.0
        %294 = vmatpush.msra.mxu0 0.0
        %295 = vmatpush.msra.mxu0 0.0
        %296 = vmatpush.msra.mxu0 0.0
        %297 = vmatpush.msra.mxu0 0.0
        %298 = vmatpush.msra.mxu0 0.0
        %299 = vmatpush.msra.mxu0 0.0
        %300 = vmatpush.msra.mxu0 0.0
        %301 = vmatpush.msra.mxu0 0.0
        %302 = vmatpush.msra.mxu0 0.0
        %303 = vmatpush.msra.mxu0 0.0
        %304 = vmatpush.msra.mxu0 %v276
        %305 = vmatmul.f32.gmra.mxu0 %v287
        %v306 = vpop.f32.mrf.mxu0
        %v307 = vadd.f32 %v283, %v306
        %308 = vdwg.mxu0
        %309 = vmatpush.msra.mxu0 0.0
        %310 = vmatpush.msra.mxu0 0.0
        %311 = vmatpush.msra.mxu0 0.0
        %312 = vmatpush.msra.mxu0 0.0
        %313 = vmatpush.msra.mxu0 0.0
        %314 = vmatpush.msra.mxu0 0.0
        %315 = vmatpush.msra.mxu0 0.0
        %316 = vmatpush.msra.mxu0 0.0
        %317 = vmatpush.msra.mxu0 0.0
        %318 = vmatpush.msra.mxu0 0.0
        %319 = vmatpush.msra.mxu0 0.0
        %320 = vmatpush.msra.mxu0 0.0
        %321 = vmatpush.msra.mxu0 0.0
        %322 = vmatpush.msra.mxu0 0.0
        %323 = vmatpush.msra.mxu0 0.0
        %324 = vmatpush.msra.mxu0 %v277
        %325 = vmatmul.f32.gmra.mxu0 %v287
        %v326 = vpop.f32.mrf.mxu0
        %v327 = vadd.f32 %v283, %v326
        %328 = vdwg.mxu0
        %329 = vst [vmem:[%s206] sm:$0xff] %v307
        %330 = vst [vmem:[%s206 + $0x8] sm:$0xff] %v327
        %s331 = sand.u32 %s112, 1
        %s332 = scalar_lea.sflag [#allocation4], %s331
        %s333 = sand.u32 %s112, 1
        %s334 = smul.addr %s333, 16
        %s335 = scalar_lea.vmem [#allocation5], %s334
        // Predicated region
        $region37: #{tpu_custom_call.1} parent=31 // pred_check
          %p336 = pneg %p122
        $region38: #{tpu_custom_call.1} parent=31 // pred_check_branch
          %338 = sbr.rel (%p336) target = $region40
        $region39: #{tpu_custom_call.1} parent=31 // pred_region
          %s339 = smul.u32 2, %s25
          %341 = vsyncadd %s332, 0
          %s342 = smul.addr %s24, 2
          %s343 = sadd.s32 %s339, %s342
          %s344 = smul.addr %s343, 8
          %s345 = scalar_lea.hbm %s3, %s344
          %s347 = sshll.u32 %s335, 4
          %s348 = int_to_ptr.vmem [resolvable:$true] %s347
          %s349 = sshll.u32 %s345, 4
          %s350 = int_to_ptr.hbm [resolvable:$true] %s349
          %352 = dma.vmem_to_hbm [thread:$0]  %s348, 256, %s350, %s332
        $region40: #{tpu_custom_call.1} parent=31 // pred_fallthru
          _
      $region32: #{tpu_custom_call.1} parent=5 // pred_fallthru
        _
      %p353 = scmp.le.s32.totalorder 2, %s15
      // Predicated region
      $region41: #{tpu_custom_call.1} parent=5 // pred_check
        %p354 = pneg %p353
      $region42: #{tpu_custom_call.1} parent=5 // pred_check_branch
        %356 = sbr.rel (%p354) target = $region44
      $region43: #{tpu_custom_call.1} parent=5 // pred_region
        %s357 = ssub.s32 %s15, 2
        // Predicated region
        $region45: #{tpu_custom_call.1} parent=43 // pred_check
          %p358 = pneg %p128
        $region46: #{tpu_custom_call.1} parent=43 // pred_check_branch
          %360 = sbr.rel (%p358) target = $region48
        $region47: #{tpu_custom_call.1} parent=43 // pred_region
          %s361 = sand.u32 %s113, 1
          %s362 = scalar_lea.sflag [#allocation4], %s361
          %s363 = sand.u32 %s113, 1
          %s364 = smul.addr %s363, 16
          %s365 = scalar_lea.vmem [#allocation5], %s364
          %367 = dma.done %s362, 256
        $region48: #{tpu_custom_call.1} parent=43 // pred_fallthru
          _
      $region44: #{tpu_custom_call.1} parent=5 // pred_fallthru
        _
    $region6: #{tpu_custom_call.1} parent=1 // loop_footer
      %s19 = sadd.s32 1, %s15
    $region7: #{tpu_custom_call.1} parent=1 // loop_footer_branch
      %14 = sbr.rel target = $region3
    $region8: #{tpu_custom_call.1} parent=1 // loop_exit
      _
    %368 = vsyncpa [#allocation3], 1
    %s369 = scalar_lea.sflag [#allocation3], 1
    %370 = vsyncpa %s369, 1
    %371 = vsyncpa [#allocation4], 1
    %s372 = scalar_lea.sflag [#allocation4], 1
    %373 = vsyncpa %s372, 1

</llo_original>
